<compile_context>
chip_gen: v7x
topology: tpu7x:2x2x1
jax: 0.10.0
libtpu: 0.0.40
codegen_flags: <defaults>
</compile_context>

<pallas_src>
import jax
import jax.numpy as jnp
from jax.experimental import pallas as pl
from jax.experimental.pallas import tpu as pltpu


# Inputs smaller than this (in elements) are computed with plain jnp: the
# fixed pallas_call launch / pipeline-setup cost and forced HBM round trip
# are a net loss for tiny activations.
_SMALL_N_ELEMS = 16 * 1024


def _target_block_bytes() -> int:
    """Per-generation streaming block size (in + out double-buffered)."""
    try:
        kind = jax.devices()[0].device_kind.lower()
    except Exception:  # pragma: no cover - defensive
        kind = ""
    # v6e / v7x: bigger blocks amortize the ~0.35us per-grid-step overhead;
    # 4 MiB => 16 MiB of double-buffered VMEM, well under the 32 MiB scoped
    # default.  Everything else (v5e: 16 MiB scoped default) stays at 2 MiB.
    if "v6" in kind or "v7" in kind:
        return 4 * 1024 * 1024
    return 2 * 1024 * 1024


def _pick_cols(n: int):
    """Lane-dense column count that divides n exactly (no padding)."""
    # Preferred: an exact multiple of 128 lanes.
    for c in (2048, 1024, 512, 256, 128):
        if n % c == 0:
            return c
    # Fallback: largest divisor of n that is a multiple of 8 (<= 2048).  The
    # block's last dim equals the full array dim, so it is always legal; only
    # the final vreg per row is partially masked.
    for c in range(2048, 7, -8):
        if n % c == 0:
            return c
    return None


def _swish_kernel(x_ref, o_ref):
    x = x_ref[...]
    # Compute in f32 in-kernel (HBM traffic stays at the input dtype).
    xf = x.astype(jnp.float32)
    # Exact sigmoid via a single EUP tanh: sigmoid(x) = 0.5*(tanh(x/2)+1).
    sig = 0.5 * (jnp.tanh(0.5 * xf) + 1.0)
    o_ref[...] = (xf * sig).astype(o_ref.dtype)


def swish(x):
    """Elementwise Swish: x * sigmoid(x), for floating-point inputs."""
    orig_shape = x.shape
    orig_dtype = x.dtype
    n = x.size
    if n == 0:
        return x

    # Small-input fast path: let XLA fuse it; Pallas launch overhead and the
    # extra HBM round-trip are not worth it for tiny activations.
    if n < _SMALL_N_ELEMS:
        return x * jax.nn.sigmoid(x)

    cols = _pick_cols(n)
    if cols is None:
        # No lane-friendly exact factorization (n not divisible by 8).
        # A lane-sparse Pallas kernel would be a perf cliff, so fall back.
        return x * jax.nn.sigmoid(x)

    rows = n // cols
    x2d = x.reshape(rows, cols)  # free metadata op for contiguous arrays

    itemsize = jnp.dtype(orig_dtype).itemsize
    # Sublane packing factor: 8 rows/f32, 16 rows/bf16, 32 rows/int8-fp8.
    pack = max(8, (8 * 4) // itemsize)

    block_bytes = _target_block_bytes()
    cand = max(1, block_bytes // (cols * itemsize))
    tile_rows = min(max(pack, (cand // pack) * pack), rows)

    # Guarantee >=2 grid steps when possible so both v7x TensorCores (and
    # their DMA bandwidth) get work; partial last tiles are handled by Pallas.
    if rows >= 2 * pack and pl.cdiv(rows, tile_rows) < 2:
        half = pl.cdiv(rows, 2)
        tile_rows = ((half + pack - 1) // pack) * pack
        tile_rows = min(tile_rows, rows)

    grid = (pl.cdiv(rows, tile_rows),)

    out2d = pl.pallas_call(
        _swish_kernel,
        out_shape=jax.ShapeDtypeStruct((rows, cols), orig_dtype),
        grid=grid,
        in_specs=[pl.BlockSpec((tile_rows, cols), lambda i: (i, 0))],
        out_specs=pl.BlockSpec((tile_rows, cols), lambda i: (i, 0)),
        compiler_params=pltpu.CompilerParams(
            dimension_semantics=("parallel",)
        ),
        cost_estimate=pl.CostEstimate(
            flops=4 * n,
            transcendentals=n,
            bytes_accessed=2 * n * itemsize,
        ),
    )(x2d)

    return out2d.reshape(orig_shape)


if __name__ == "__main__":
    key = jax.random.PRNGKey(0)
    k1, k2, k3, k4 = jax.random.split(key, 4)

    # 1) Small Squeezeformer-like activation (batch, seq, hidden): fast path.
    x = jax.random.normal(k1, (2, 8, 32), dtype=jnp.float32)
    out = jax.block_until_ready(swish(x))
    ref = x * jax.nn.sigmoid(x)
    assert out.shape == x.shape and out.dtype == x.dtype
    assert jnp.allclose(out, ref, atol=1e-5, rtol=1e-5)

    # 2) Awkward element count (not divisible by 128): fast/fallback path.
    y = jax.random.normal(k2, (3, 17, 40), dtype=jnp.float32)
    out_y = jax.block_until_ready(swish(y))
    ref_y = y * jax.nn.sigmoid(y)
    assert out_y.shape == y.shape and out_y.dtype == y.dtype
    assert jnp.allclose(out_y, ref_y, atol=1e-5, rtol=1e-5)

    # 3) Larger f32 activation: exercises the Pallas streaming kernel
    #    (cols=2048, rows=96, 2-step parallel grid).
    z = jax.random.normal(k3, (8, 64, 384), dtype=jnp.float32)
    out_z = jax.block_until_ready(swish(z))
    ref_z = z * jax.nn.sigmoid(z)
    assert out_z.shape == z.shape and out_z.dtype == z.dtype
    assert jnp.allclose(out_z, ref_z, atol=1e-5, rtol=1e-5)

    # 4) bf16 activation: exercises dtype-aware (16,128) tiling in the kernel.
    w = jax.random.normal(k4, (2, 256, 512), dtype=jnp.float32)
    w_bf16 = w.astype(jnp.bfloat16)
    out_w = jax.block_until_ready(swish(w_bf16))
    ref_w = (w * jax.nn.sigmoid(w)).astype(jnp.bfloat16)
    assert out_w.shape == w_bf16.shape and out_w.dtype == jnp.bfloat16
    assert jnp.allclose(out_w.astype(jnp.float32), ref_w.astype(jnp.float32),
                        atol=5e-2, rtol=2e-2)

    print("KERNEL_OK")
</pallas_src>

<mosaic_0001>
module attributes {stable_mosaic.version = 11 : i64} {
  func.func @_swish_kernel(%arg0: i32, %arg1: memref<48x2048xf32, #tpu.memory_space<vmem>>, %arg2: memref<48x2048xf32, #tpu.memory_space<vmem>>) attributes {dimension_semantics = [#tpu.dimension_semantics<parallel>], iteration_bounds = array<i64: 2>, scalar_prefetch = 0 : i64, scratch_operands = 0 : i64, tpu.core_type = #tpu.core_type<tc>, window_params = [{transform_indices = @transform_0, window_bounds = array<i64: 48, 2048>}, {transform_indices = @transform_1, window_bounds = array<i64: 48, 2048>}]} {
    %c0 = arith.constant 0 : index
    %c0_0 = arith.constant 0 : index
    %0 = vector.load %arg1[%c0, %c0_0] : memref<48x2048xf32, #tpu.memory_space<vmem>>, vector<48x2048xf32>
    %cst = arith.constant 5.000000e-01 : f32
    %1 = vector.broadcast %cst : f32 to vector<48x2048xf32>
    %2 = arith.mulf %1, %0 : vector<48x2048xf32>
    %3 = math.tanh %2 : vector<48x2048xf32>
    %cst_1 = arith.constant 1.000000e+00 : f32
    %4 = vector.broadcast %cst_1 : f32 to vector<48x2048xf32>
    %5 = arith.addf %3, %4 : vector<48x2048xf32>
    %cst_2 = arith.constant 5.000000e-01 : f32
    %6 = vector.broadcast %cst_2 : f32 to vector<48x2048xf32>
    %7 = arith.mulf %6, %5 : vector<48x2048xf32>
    %8 = arith.mulf %0, %7 : vector<48x2048xf32>
    %c0_3 = arith.constant 0 : index
    %c0_4 = arith.constant 0 : index
    %9 = vector.load %arg2[%c0_3, %c0_4] : memref<48x2048xf32, #tpu.memory_space<vmem>>, vector<48x2048xf32>
    tpu.vector_store %arg2[%c0_3, %c0_4], %8 {strides = array<i32>} : memref<48x2048xf32, #tpu.memory_space<vmem>>, vector<48x2048xf32>,
    return
  }
  func.func @transform_0(%arg0: i32) -> (i32, i32) {
    %c0_i32 = arith.constant 0 : i32
    %c0_i32_0 = arith.constant 0 : i32
    return %arg0, %c0_i32 : i32, i32
  }
  func.func @transform_1(%arg0: i32) -> (i32, i32) {
    %c0_i32 = arith.constant 0 : i32
    %c0_i32_0 = arith.constant 0 : i32
    return %arg0, %c0_i32 : i32, i32
  }
}

</mosaic_0001>

<llo_original>
// kernel: tpu_custom_call.1
$region0: #{tpu_custom_call.1}
  #allocation0 [shape = 'u32[]', space=smem, size = 0x4, offset = 0x4, fixed_abs, tag = 'smem constant byte address 0x4 - core index']
  #allocation1 [shape = 'u32[144,128]{1,0:T(1,128)}', space=vmem, size = 0x12000, scoped, tag = 'internal scratch']
  %s0 = inlined_call_operand.hbm [shape: f32[96,2048], index: 0, kind: input, shape index: {}]
  %s1 = inlined_call_operand.hbm [shape: f32[96,2048], index: 1, kind: output, shape index: {}]
  %s2 = sld [smem:[#allocation0]]
  $region41: #{tpu_custom_call.1} parent=0
    _
  %s4 = ssub.s32 1, %s2
  %s5 = scalar_select 0, %s4, %s2
  $region1: #{tpu_custom_call.1} parent=0
    #allocation2 [shape = 'u8[786432]{0}', space=vmem, size = 0xc0000, scoped, tag = 'input window, operand 0']
    #allocation3 [shape = 's32[2]{0}', space=sflag, size = 0x8, scoped, tag = 'scoped memory for tpu_custom_call.1']
    #allocation4 [shape = 's32[2]{0}', space=sflag, size = 0x8, scoped, tag = 'scoped memory for tpu_custom_call.1']
    #allocation5 [shape = 'u8[786432]{0}', space=vmem, size = 0xc0000, scoped, tag = 'output window, operand 0']
    %6 = vsyncpa [#allocation3], 0
    %s7 = scalar_lea.sflag [#allocation3], 1
    %8 = vsyncpa %s7, 0
    %9 = vsyncpa [#allocation4], 0
    %s10 = scalar_lea.sflag [#allocation4], 1
    %11 = vsyncpa %s10, 0
    loop: start=0, step=1, limit=4
    $region2: #{tpu_custom_call.1} parent=1 // loop_pre_header
      _
    $region3: #{tpu_custom_call.1} parent=1 // loop_header
      %s13 = sphi 0, %s17
      %p14 = scmp.ge.s32.totalorder %s13, 4
      %s23 = sphi 0, %s25
      %s26 = sphi 0, %s23
      %s27 = sphi 0, %s26
      %s43 = sphi 0, %s27
      %s49 = sphi 0, %s51
      %s52 = sphi 0, %s49
      %s53 = sphi 0, %s52
      %s69 = sphi 0, %s53
    $region4: #{tpu_custom_call.1} parent=1 // loop_header_branch
      %16 = sbr.rel (%p14) target = $region8
    $region5: #{tpu_custom_call.1} parent=1 // loop_body
      %s18 = ssub.s32 %s13, 1
      %s19 = ssub.s32 %s13, 2
      %s20 = sadd.s32 %s13, 1
      %s21 = ssub.s32 %s13, %s20
      %p22 = scmp.eq.s32.totalorder %s21, 0
      %s24 = sadd.s32 %s23, 1
      %s25 = scalar_select %p22, %s23, %s24
      %p28 = pneg %p22
      %p29 = scmp.eq.s32.totalorder %s13, 1
      %p30 = por %p28, %p29
      %p31 = scmp.ne.s32.totalorder %s23, %s26
      %p32 = scmp.eq.s32.totalorder %s13, 0
      %p33 = por %p31, %p32
      %p34 = scmp.ne.s32.totalorder %s23, %s26
      %p35 = scmp.eq.s32.totalorder %s18, 1
      %p36 = por %p34, %p35
      %p37 = scmp.ne.s32.totalorder %s26, %s27
      %p38 = scmp.eq.s32.totalorder %s18, 0
      %p39 = por %p37, %p38
      %p40 = scmp.ne.s32.totalorder %s26, %s27
      %p41 = scmp.eq.s32.totalorder %s19, 1
      %p42 = por %p40, %p41
      %p44 = scmp.ne.s32.totalorder %s27, %s43
      %p45 = scmp.eq.s32.totalorder %s19, 0
      %p46 = por %p44, %p45
      %s47 = ssub.s32 %s13, %s20
      %p48 = scmp.eq.s32.totalorder %s47, 0
      %s50 = sadd.s32 %s49, 1
      %s51 = scalar_select %p48, %s49, %s50
      %p54 = pneg %p48
      %p55 = scmp.eq.s32.totalorder %s13, 1
      %p56 = por %p54, %p55
      %p57 = scmp.ne.s32.totalorder %s49, %s52
      %p58 = scmp.eq.s32.totalorder %s13, 0
      %p59 = por %p57, %p58
      %p60 = scmp.ne.s32.totalorder %s49, %s52
      %p61 = scmp.eq.s32.totalorder %s18, 1
      %p62 = por %p60, %p61
      %p63 = scmp.ne.s32.totalorder %s52, %s53
      %p64 = scmp.eq.s32.totalorder %s18, 0
      %p65 = por %p63, %p64
      %p66 = scmp.ne.s32.totalorder %s52, %s53
      %p67 = scmp.eq.s32.totalorder %s19, 1
      %p68 = por %p66, %p67
      %p70 = scmp.ne.s32.totalorder %s53, %s69
      %p71 = scmp.eq.s32.totalorder %s19, 0
      %p72 = por %p70, %p71
      %p73 = scmp.le.s32.totalorder 1, %s13
      %p74 = scmp.lt.s32.totalorder %s13, 3
      %p75 = pnand %p73, %p74
      %p76 = pneg %p75
      // Predicated region
      $region9: #{tpu_custom_call.1} parent=5 // pred_check
        _
      $region10: #{tpu_custom_call.1} parent=5 // pred_check_branch
        %78 = sbr.rel (%p75) target = $region12
      $region11: #{tpu_custom_call.1} parent=5 // pred_region
        %s79 = ssub.s32 %s13, 1
      $region12: #{tpu_custom_call.1} parent=5 // pred_fallthru
        _
      %p80 = scmp.lt.s32.totalorder %s13, 2
      // Predicated region
      $region13: #{tpu_custom_call.1} parent=5 // pred_check
        %p81 = pneg %p80
      $region14: #{tpu_custom_call.1} parent=5 // pred_check_branch
        %83 = sbr.rel (%p81) target = $region16
      $region15: #{tpu_custom_call.1} parent=5 // pred_region
        // Predicated region
        $region17: #{tpu_custom_call.1} parent=15 // pred_check
          %p84 = pneg %p33
        $region18: #{tpu_custom_call.1} parent=15 // pred_check_branch
          %86 = sbr.rel (%p84) target = $region20
        $region19: #{tpu_custom_call.1} parent=15 // pred_region
          %s87 = sand.u32 %s23, 1
          %s88 = scalar_lea.sflag [#allocation3], %s87
          %s89 = sand.u32 %s23, 1
          %s90 = smul.addr %s89, 768
          %s91 = scalar_lea.vmem [#allocation2], %s90
          %s92 = smul.u32 6, %s13
          %s94 = ssub.s32 12288, 12288
          %95 = vsyncadd %s88, %s94
          %s96 = smul.addr %s92, 16
          %s97 = smul.addr %s96, 128
          %s98 = scalar_lea.hbm %s0, %s97
          %s99 = sshll.u32 %s91, 4
          %s100 = int_to_ptr.vmem [resolvable:$true] %s99
          %105 = dma.hbm_to_vmem [thread:$0]  %s98, 12288, %s100, %s88, 2048, 2048, 128
        $region20: #{tpu_custom_call.1} parent=15 // pred_fallthru
          _
      $region16: #{tpu_custom_call.1} parent=5 // pred_fallthru
        _
      %p106 = scmp.le.s32.totalorder 1, %s13
      %p107 = scmp.lt.s32.totalorder %s13, 3
      %p108 = pnand %p106, %p107
      %p109 = pneg %p108
      // Predicated region
      $region21: #{tpu_custom_call.1} parent=5 // pred_check
        _
      $region22: #{tpu_custom_call.1} parent=5 // pred_check_branch
        %111 = sbr.rel (%p108) target = $region24
      $region23: #{tpu_custom_call.1} parent=5 // pred_region
        %s112 = ssub.s32 %s13, 1
        %s113 = sand.u32 %s26, 1
        %s114 = scalar_lea.sflag [#allocation3], %s113
        %s115 = sand.u32 %s26, 1
        %s116 = smul.addr %s115, 768
        %s117 = scalar_lea.vmem [#allocation2], %s116
        // Predicated region
        $region25: #{tpu_custom_call.1} parent=23 // pred_check
          %p118 = pneg %p39
        $region26: #{tpu_custom_call.1} parent=23 // pred_check_branch
          %120 = sbr.rel (%p118) target = $region28
        $region27: #{tpu_custom_call.1} parent=23 // pred_region
          %121 = dma.done %s114, 12288
        $region28: #{tpu_custom_call.1} parent=23 // pred_fallthru
          _
        %s122 = sand.u32 %s26, 1
        %s123 = scalar_lea.sflag [#allocation3], %s122
        %s124 = sand.u32 %s26, 1
        %s125 = smul.addr %s124, 768
        %s126 = scalar_lea.vmem [#allocation2], %s125
        %p127 = pneg %p39
        %p128 = pneg %p36
        %p129 = pneg %p65
        %p130 = pneg %p62
        %s131 = sand.u32 %s52, 1
        %s132 = scalar_lea.sflag [#allocation4], %s131
        %s133 = sand.u32 %s52, 1
        %s134 = smul.addr %s133, 768
        %s135 = scalar_lea.vmem [#allocation5], %s134
        %s136 = smul.u32 6, %s18
        %s137 = smul.u32 6, %s18
        %v138 = vld [vmem:[%s117] sm:$0xff]
        %v139 = vld [vmem:[%s117 + $0x8] sm:$0xff]
        %v140 = vld [vmem:[%s117 + $0x10] sm:$0xff]
        %v141 = vld [vmem:[%s117 + $0x18] sm:$0xff]
        %v142 = vld [vmem:[%s117 + $0x20] sm:$0xff]
        %v143 = vld [vmem:[%s117 + $0x28] sm:$0xff]
        %v144 = vld [vmem:[%s117 + $0x30] sm:$0xff]
        %v145 = vld [vmem:[%s117 + $0x38] sm:$0xff]
        %v146 = vld [vmem:[%s117 + $0x40] sm:$0xff]
        %v147 = vld [vmem:[%s117 + $0x48] sm:$0xff]
        %v148 = vld [vmem:[%s117 + $0x50] sm:$0xff]
        %v149 = vld [vmem:[%s117 + $0x58] sm:$0xff]
        %v150 = vld [vmem:[%s117 + $0x60] sm:$0xff]
        %v151 = vld [vmem:[%s117 + $0x68] sm:$0xff]
        %v152 = vld [vmem:[%s117 + $0x70] sm:$0xff]
        %v153 = vld [vmem:[%s117 + $0x78] sm:$0xff]
        %v154 = vld [vmem:[%s117 + $0x80] sm:$0xff]
        %v155 = vld [vmem:[%s117 + $0x88] sm:$0xff]
        %v156 = vld [vmem:[%s117 + $0x90] sm:$0xff]
        %v157 = vld [vmem:[%s117 + $0x98] sm:$0xff]
        %v158 = vld [vmem:[%s117 + $0xa0] sm:$0xff]
        %v159 = vld [vmem:[%s117 + $0xa8] sm:$0xff]
        %v160 = vld [vmem:[%s117 + $0xb0] sm:$0xff]
        %v161 = vld [vmem:[%s117 + $0xb8] sm:$0xff]
        %v162 = vld [vmem:[%s117 + $0xc0] sm:$0xff]
        %v163 = vld [vmem:[%s117 + $0xc8] sm:$0xff]
        %v164 = vld [vmem:[%s117 + $0xd0] sm:$0xff]
        %v165 = vld [vmem:[%s117 + $0xd8] sm:$0xff]
        %v166 = vld [vmem:[%s117 + $0xe0] sm:$0xff]
        %v167 = vld [vmem:[%s117 + $0xe8] sm:$0xff]
        %v168 = vld [vmem:[%s117 + $0xf0] sm:$0xff]
        %v169 = vld [vmem:[%s117 + $0xf8] sm:$0xff]
        %v170 = vld [vmem:[%s117 + $0x100] sm:$0xff]
        %v171 = vld [vmem:[%s117 + $0x108] sm:$0xff]
        %v172 = vld [vmem:[%s117 + $0x110] sm:$0xff]
        %v173 = vld [vmem:[%s117 + $0x118] sm:$0xff]
        %v174 = vld [vmem:[%s117 + $0x120] sm:$0xff]
        %v175 = vld [vmem:[%s117 + $0x128] sm:$0xff]
        %v176 = vld [vmem:[%s117 + $0x130] sm:$0xff]
        %v177 = vld [vmem:[%s117 + $0x138] sm:$0xff]
        %v178 = vld [vmem:[%s117 + $0x140] sm:$0xff]
        %v179 = vld [vmem:[%s117 + $0x148] sm:$0xff]
        %v180 = vld [vmem:[%s117 + $0x150] sm:$0xff]
        %v181 = vld [vmem:[%s117 + $0x158] sm:$0xff]
        %v182 = vld [vmem:[%s117 + $0x160] sm:$0xff]
        %v183 = vld [vmem:[%s117 + $0x168] sm:$0xff]
        %v184 = vld [vmem:[%s117 + $0x170] sm:$0xff]
        %v185 = vld [vmem:[%s117 + $0x178] sm:$0xff]
        %v186 = vld [vmem:[%s117 + $0x180] sm:$0xff]
        %v187 = vld [vmem:[%s117 + $0x188] sm:$0xff]
        %v188 = vld [vmem:[%s117 + $0x190] sm:$0xff]
        %v189 = vld [vmem:[%s117 + $0x198] sm:$0xff]
        %v190 = vld [vmem:[%s117 + $0x1a0] sm:$0xff]
        %v191 = vld [vmem:[%s117 + $0x1a8] sm:$0xff]
        %v192 = vld [vmem:[%s117 + $0x1b0] sm:$0xff]
        %v193 = vld [vmem:[%s117 + $0x1b8] sm:$0xff]
        %v194 = vld [vmem:[%s117 + $0x1c0] sm:$0xff]
        %v195 = vld [vmem:[%s117 + $0x1c8] sm:$0xff]
        %v196 = vld [vmem:[%s117 + $0x1d0] sm:$0xff]
        %v197 = vld [vmem:[%s117 + $0x1d8] sm:$0xff]
        %v198 = vld [vmem:[%s117 + $0x1e0] sm:$0xff]
        %v199 = vld [vmem:[%s117 + $0x1e8] sm:$0xff]
        %v200 = vld [vmem:[%s117 + $0x1f0] sm:$0xff]
        %v201 = vld [vmem:[%s117 + $0x1f8] sm:$0xff]
        %v202 = vld [vmem:[%s117 + $0x200] sm:$0xff]
        %v203 = vld [vmem:[%s117 + $0x208] sm:$0xff]
        %v204 = vld [vmem:[%s117 + $0x210] sm:$0xff]
        %v205 = vld [vmem:[%s117 + $0x218] sm:$0xff]
        %v206 = vld [vmem:[%s117 + $0x220] sm:$0xff]
        %v207 = vld [vmem:[%s117 + $0x228] sm:$0xff]
        %v208 = vld [vmem:[%s117 + $0x230] sm:$0xff]
        %v209 = vld [vmem:[%s117 + $0x238] sm:$0xff]
        %v210 = vld [vmem:[%s117 + $0x240] sm:$0xff]
        %v211 = vld [vmem:[%s117 + $0x248] sm:$0xff]
        %v212 = vld [vmem:[%s117 + $0x250] sm:$0xff]
        %v213 = vld [vmem:[%s117 + $0x258] sm:$0xff]
        %v214 = vld [vmem:[%s117 + $0x260] sm:$0xff]
        %v215 = vld [vmem:[%s117 + $0x268] sm:$0xff]
        %v216 = vld [vmem:[%s117 + $0x270] sm:$0xff]
        %v217 = vld [vmem:[%s117 + $0x278] sm:$0xff]
        %v218 = vld [vmem:[%s117 + $0x280] sm:$0xff]
        %v219 = vld [vmem:[%s117 + $0x288] sm:$0xff]
        %v220 = vld [vmem:[%s117 + $0x290] sm:$0xff]
        %v221 = vld [vmem:[%s117 + $0x298] sm:$0xff]
        %v222 = vld [vmem:[%s117 + $0x2a0] sm:$0xff]
        %v223 = vld [vmem:[%s117 + $0x2a8] sm:$0xff]
        %v224 = vld [vmem:[%s117 + $0x2b0] sm:$0xff]
        %v225 = vld [vmem:[%s117 + $0x2b8] sm:$0xff]
        %v226 = vld [vmem:[%s117 + $0x2c0] sm:$0xff]
        %v227 = vld [vmem:[%s117 + $0x2c8] sm:$0xff]
        %v228 = vld [vmem:[%s117 + $0x2d0] sm:$0xff]
        %v229 = vld [vmem:[%s117 + $0x2d8] sm:$0xff]
        %v230 = vld [vmem:[%s117 + $0x2e0] sm:$0xff]
        %v231 = vld [vmem:[%s117 + $0x2e8] sm:$0xff]
        %v232 = vld [vmem:[%s117 + $0x2f0] sm:$0xff]
        %v233 = vld [vmem:[%s117 + $0x2f8] sm:$0xff]
        %v234 = vmul.f32 %v138, 0.5
        %v235 = vmul.f32 %v139, 0.5
        %v236 = vmul.f32 %v140, 0.5
        %v237 = vmul.f32 %v141, 0.5
        %v238 = vmul.f32 %v142, 0.5
        %v239 = vmul.f32 %v143, 0.5
        %v240 = vmul.f32 %v144, 0.5
        %v241 = vmul.f32 %v145, 0.5
        %v242 = vmul.f32 %v146, 0.5
        %v243 = vmul.f32 %v147, 0.5
        %v244 = vmul.f32 %v148, 0.5
        %v245 = vmul.f32 %v149, 0.5
        %v246 = vmul.f32 %v150, 0.5
        %v247 = vmul.f32 %v151, 0.5
        %v248 = vmul.f32 %v152, 0.5
        %v249 = vmul.f32 %v153, 0.5
        %v250 = vmul.f32 %v154, 0.5
        %v251 = vmul.f32 %v155, 0.5
        %v252 = vmul.f32 %v156, 0.5
        %v253 = vmul.f32 %v157, 0.5
        %v254 = vmul.f32 %v158, 0.5
        %v255 = vmul.f32 %v159, 0.5
        %v256 = vmul.f32 %v160, 0.5
        %v257 = vmul.f32 %v161, 0.5
        %v258 = vmul.f32 %v162, 0.5
        %v259 = vmul.f32 %v163, 0.5
        %v260 = vmul.f32 %v164, 0.5
        %v261 = vmul.f32 %v165, 0.5
        %v262 = vmul.f32 %v166, 0.5
        %v263 = vmul.f32 %v167, 0.5
        %v264 = vmul.f32 %v168, 0.5
        %v265 = vmul.f32 %v169, 0.5
        %v266 = vmul.f32 %v170, 0.5
        %v267 = vmul.f32 %v171, 0.5
        %v268 = vmul.f32 %v172, 0.5
        %v269 = vmul.f32 %v173, 0.5
        %v270 = vmul.f32 %v174, 0.5
        %v271 = vmul.f32 %v175, 0.5
        %v272 = vmul.f32 %v176, 0.5
        %v273 = vmul.f32 %v177, 0.5
        %v274 = vmul.f32 %v178, 0.5
        %v275 = vmul.f32 %v179, 0.5
        %v276 = vmul.f32 %v180, 0.5
        %v277 = vmul.f32 %v181, 0.5
        %v278 = vmul.f32 %v182, 0.5
        %v279 = vmul.f32 %v183, 0.5
        %v280 = vmul.f32 %v184, 0.5
        %v281 = vmul.f32 %v185, 0.5
        %v282 = vmul.f32 %v186, 0.5
        %v283 = vmul.f32 %v187, 0.5
        %v284 = vmul.f32 %v188, 0.5
        %v285 = vmul.f32 %v189, 0.5
        %v286 = vmul.f32 %v190, 0.5
        %v287 = vmul.f32 %v191, 0.5
        %v288 = vmul.f32 %v192, 0.5
        %v289 = vmul.f32 %v193, 0.5
        %v290 = vmul.f32 %v194, 0.5
        %v291 = vmul.f32 %v195, 0.5
        %v292 = vmul.f32 %v196, 0.5
        %v293 = vmul.f32 %v197, 0.5
        %v294 = vmul.f32 %v198, 0.5
        %v295 = vmul.f32 %v199, 0.5
        %v296 = vmul.f32 %v200, 0.5
        %v297 = vmul.f32 %v201, 0.5
        %v298 = vmul.f32 %v202, 0.5
        %v299 = vmul.f32 %v203, 0.5
        %v300 = vmul.f32 %v204, 0.5
        %v301 = vmul.f32 %v205, 0.5
        %v302 = vmul.f32 %v206, 0.5
        %v303 = vmul.f32 %v207, 0.5
        %v304 = vmul.f32 %v208, 0.5
        %v305 = vmul.f32 %v209, 0.5
        %v306 = vmul.f32 %v210, 0.5
        %v307 = vmul.f32 %v211, 0.5
        %v308 = vmul.f32 %v212, 0.5
        %v309 = vmul.f32 %v213, 0.5
        %v310 = vmul.f32 %v214, 0.5
        %v311 = vmul.f32 %v215, 0.5
        %v312 = vmul.f32 %v216, 0.5
        %v313 = vmul.f32 %v217, 0.5
        %v314 = vmul.f32 %v218, 0.5
        %v315 = vmul.f32 %v219, 0.5
        %v316 = vmul.f32 %v220, 0.5
        %v317 = vmul.f32 %v221, 0.5
        %v318 = vmul.f32 %v222, 0.5
        %v319 = vmul.f32 %v223, 0.5
        %v320 = vmul.f32 %v224, 0.5
        %v321 = vmul.f32 %v225, 0.5
        %v322 = vmul.f32 %v226, 0.5
        %v323 = vmul.f32 %v227, 0.5
        %v324 = vmul.f32 %v228, 0.5
        %v325 = vmul.f32 %v229, 0.5
        %v326 = vmul.f32 %v230, 0.5
        %v327 = vmul.f32 %v231, 0.5
        %v328 = vmul.f32 %v232, 0.5
        %v329 = vmul.f32 %v233, 0.5
        %v330 = vtanh.pop %v234
        %v331 = vtanh.pop %v235
        %v332 = vtanh.pop %v236
        %v333 = vtanh.pop %v237
        %v334 = vtanh.pop %v238
        %v335 = vtanh.pop %v239
        %v336 = vtanh.pop %v240
        %v337 = vtanh.pop %v241
        %v338 = vtanh.pop %v242
        %v339 = vtanh.pop %v243
        %v340 = vtanh.pop %v244
        %v341 = vtanh.pop %v245
        %v342 = vtanh.pop %v246
        %v343 = vtanh.pop %v247
        %v344 = vtanh.pop %v248
        %v345 = vtanh.pop %v249
        %v346 = vtanh.pop %v250
        %v347 = vtanh.pop %v251
        %v348 = vtanh.pop %v252
        %v349 = vtanh.pop %v253
        %v350 = vtanh.pop %v254
        %v351 = vtanh.pop %v255
        %v352 = vtanh.pop %v256
        %v353 = vtanh.pop %v257
        %v354 = vtanh.pop %v258
        %v355 = vtanh.pop %v259
        %v356 = vtanh.pop %v260
        %v357 = vtanh.pop %v261
        %v358 = vtanh.pop %v262
        %v359 = vtanh.pop %v263
        %v360 = vtanh.pop %v264
        %v361 = vtanh.pop %v265
        %v362 = vtanh.pop %v266
        %v363 = vtanh.pop %v267
        %v364 = vtanh.pop %v268
        %v365 = vtanh.pop %v269
        %v366 = vtanh.pop %v270
        %v367 = vtanh.pop %v271
        %v368 = vtanh.pop %v272
        %v369 = vtanh.pop %v273
        %v370 = vtanh.pop %v274
        %v371 = vtanh.pop %v275
        %v372 = vtanh.pop %v276
        %v373 = vtanh.pop %v277
        %v374 = vtanh.pop %v278
        %v375 = vtanh.pop %v279
        %v376 = vtanh.pop %v280
        %v377 = vtanh.pop %v281
        %v378 = vtanh.pop %v282
        %v379 = vtanh.pop %v283
        %v380 = vtanh.pop %v284
        %v381 = vtanh.pop %v285
        %v382 = vtanh.pop %v286
        %v383 = vtanh.pop %v287
        %v384 = vtanh.pop %v288
        %v385 = vtanh.pop %v289
        %v386 = vtanh.pop %v290
        %v387 = vtanh.pop %v291
        %v388 = vtanh.pop %v292
        %v389 = vtanh.pop %v293
        %v390 = vtanh.pop %v294
        %v391 = vtanh.pop %v295
        %v392 = vtanh.pop %v296
        %v393 = vtanh.pop %v297
        %v394 = vtanh.pop %v298
        %v395 = vtanh.pop %v299
        %v396 = vtanh.pop %v300
        %v397 = vtanh.pop %v301
        %v398 = vtanh.pop %v302
        %v399 = vtanh.pop %v303
        %v400 = vtanh.pop %v304
        %v401 = vtanh.pop %v305
        %v402 = vtanh.pop %v306
        %v403 = vtanh.pop %v307
        %v404 = vtanh.pop %v308
        %v405 = vtanh.pop %v309
        %v406 = vtanh.pop %v310
        %v407 = vtanh.pop %v311
        %v408 = vtanh.pop %v312
        %v409 = vtanh.pop %v313
        %v410 = vtanh.pop %v314
        %v411 = vtanh.pop %v315
        %v412 = vtanh.pop %v316
        %v413 = vtanh.pop %v317
        %v414 = vtanh.pop %v318
        %v415 = vtanh.pop %v319
        %v416 = vtanh.pop %v320
        %v417 = vtanh.pop %v321
        %v418 = vtanh.pop %v322
        %v419 = vtanh.pop %v323
        %v420 = vtanh.pop %v324
        %v421 = vtanh.pop %v325
        %v422 = vtanh.pop %v326
        %v423 = vtanh.pop %v327
        %v424 = vtanh.pop %v328
        %v425 = vtanh.pop %v329
        %v426 = vadd.f32 %v330, 1.0
        %v427 = vadd.f32 %v331, 1.0
        %v428 = vadd.f32 %v332, 1.0
        %v429 = vadd.f32 %v333, 1.0
        %v430 = vadd.f32 %v334, 1.0
        %v431 = vadd.f32 %v335, 1.0
        %v432 = vadd.f32 %v336, 1.0
        %v433 = vadd.f32 %v337, 1.0
        %v434 = vadd.f32 %v338, 1.0
        %v435 = vadd.f32 %v339, 1.0
        %v436 = vadd.f32 %v340, 1.0
        %v437 = vadd.f32 %v341, 1.0
        %v438 = vadd.f32 %v342, 1.0
        %v439 = vadd.f32 %v343, 1.0
        %v440 = vadd.f32 %v344, 1.0
        %v441 = vadd.f32 %v345, 1.0
        %v442 = vadd.f32 %v346, 1.0
        %v443 = vadd.f32 %v347, 1.0
        %v444 = vadd.f32 %v348, 1.0
        %v445 = vadd.f32 %v349, 1.0
        %v446 = vadd.f32 %v350, 1.0
        %v447 = vadd.f32 %v351, 1.0
        %v448 = vadd.f32 %v352, 1.0
        %v449 = vadd.f32 %v353, 1.0
        %v450 = vadd.f32 %v354, 1.0
        %v451 = vadd.f32 %v355, 1.0
        %v452 = vadd.f32 %v356, 1.0
        %v453 = vadd.f32 %v357, 1.0
        %v454 = vadd.f32 %v358, 1.0
        %v455 = vadd.f32 %v359, 1.0
        %v456 = vadd.f32 %v360, 1.0
        %v457 = vadd.f32 %v361, 1.0
        %v458 = vadd.f32 %v362, 1.0
        %v459 = vadd.f32 %v363, 1.0
        %v460 = vadd.f32 %v364, 1.0
        %v461 = vadd.f32 %v365, 1.0
        %v462 = vadd.f32 %v366, 1.0
        %v463 = vadd.f32 %v367, 1.0
        %v464 = vadd.f32 %v368, 1.0
        %v465 = vadd.f32 %v369, 1.0
        %v466 = vadd.f32 %v370, 1.0
        %v467 = vadd.f32 %v371, 1.0
        %v468 = vadd.f32 %v372, 1.0
        %v469 = vadd.f32 %v373, 1.0
        %v470 = vadd.f32 %v374, 1.0
        %v471 = vadd.f32 %v375, 1.0
        %v472 = vadd.f32 %v376, 1.0
        %v473 = vadd.f32 %v377, 1.0
        %v474 = vadd.f32 %v378, 1.0
        %v475 = vadd.f32 %v379, 1.0
        %v476 = vadd.f32 %v380, 1.0
        %v477 = vadd.f32 %v381, 1.0
        %v478 = vadd.f32 %v382, 1.0
        %v479 = vadd.f32 %v383, 1.0
        %v480 = vadd.f32 %v384, 1.0
        %v481 = vadd.f32 %v385, 1.0
        %v482 = vadd.f32 %v386, 1.0
        %v483 = vadd.f32 %v387, 1.0
        %v484 = vadd.f32 %v388, 1.0
        %v485 = vadd.f32 %v389, 1.0
        %v486 = vadd.f32 %v390, 1.0
        %v487 = vadd.f32 %v391, 1.0
        %v488 = vadd.f32 %v392, 1.0
        %v489 = vadd.f32 %v393, 1.0
        %v490 = vadd.f32 %v394, 1.0
        %v491 = vadd.f32 %v395, 1.0
        %v492 = vadd.f32 %v396, 1.0
        %v493 = vadd.f32 %v397, 1.0
        %v494 = vadd.f32 %v398, 1.0
        %v495 = vadd.f32 %v399, 1.0
        %v496 = vadd.f32 %v400, 1.0
        %v497 = vadd.f32 %v401, 1.0
        %v498 = vadd.f32 %v402, 1.0
        %v499 = vadd.f32 %v403, 1.0
        %v500 = vadd.f32 %v404, 1.0
        %v501 = vadd.f32 %v405, 1.0
        %v502 = vadd.f32 %v406, 1.0
        %v503 = vadd.f32 %v407, 1.0
        %v504 = vadd.f32 %v408, 1.0
        %v505 = vadd.f32 %v409, 1.0
        %v506 = vadd.f32 %v410, 1.0
        %v507 = vadd.f32 %v411, 1.0
        %v508 = vadd.f32 %v412, 1.0
        %v509 = vadd.f32 %v413, 1.0
        %v510 = vadd.f32 %v414, 1.0
        %v511 = vadd.f32 %v415, 1.0
        %v512 = vadd.f32 %v416, 1.0
        %v513 = vadd.f32 %v417, 1.0
        %v514 = vadd.f32 %v418, 1.0
        %v515 = vadd.f32 %v419, 1.0
        %v516 = vadd.f32 %v420, 1.0
        %v517 = vadd.f32 %v421, 1.0
        %v518 = vadd.f32 %v422, 1.0
        %v519 = vadd.f32 %v423, 1.0
        %v520 = vadd.f32 %v424, 1.0
        %v521 = vadd.f32 %v425, 1.0
        %v522 = vmul.f32 %v426, 0.5
        %v523 = vmul.f32 %v427, 0.5
        %v524 = vmul.f32 %v428, 0.5
        %v525 = vmul.f32 %v429, 0.5
        %v526 = vmul.f32 %v430, 0.5
        %v527 = vmul.f32 %v431, 0.5
        %v528 = vmul.f32 %v432, 0.5
        %v529 = vmul.f32 %v433, 0.5
        %v530 = vmul.f32 %v434, 0.5
        %v531 = vmul.f32 %v435, 0.5
        %v532 = vmul.f32 %v436, 0.5
        %v533 = vmul.f32 %v437, 0.5
        %v534 = vmul.f32 %v438, 0.5
        %v535 = vmul.f32 %v439, 0.5
        %v536 = vmul.f32 %v440, 0.5
        %v537 = vmul.f32 %v441, 0.5
        %v538 = vmul.f32 %v442, 0.5
        %v539 = vmul.f32 %v443, 0.5
        %v540 = vmul.f32 %v444, 0.5
        %v541 = vmul.f32 %v445, 0.5
        %v542 = vmul.f32 %v446, 0.5
        %v543 = vmul.f32 %v447, 0.5
        %v544 = vmul.f32 %v448, 0.5
        %v545 = vmul.f32 %v449, 0.5
        %v546 = vmul.f32 %v450, 0.5
        %v547 = vmul.f32 %v451, 0.5
        %v548 = vmul.f32 %v452, 0.5
        %v549 = vmul.f32 %v453, 0.5
        %v550 = vmul.f32 %v454, 0.5
        %v551 = vmul.f32 %v455, 0.5
        %v552 = vmul.f32 %v456, 0.5
        %v553 = vmul.f32 %v457, 0.5
        %v554 = vmul.f32 %v458, 0.5
        %v555 = vmul.f32 %v459, 0.5
        %v556 = vmul.f32 %v460, 0.5
        %v557 = vmul.f32 %v461, 0.5
        %v558 = vmul.f32 %v462, 0.5
        %v559 = vmul.f32 %v463, 0.5
        %v560 = vmul.f32 %v464, 0.5
        %v561 = vmul.f32 %v465, 0.5
        %v562 = vmul.f32 %v466, 0.5
        %v563 = vmul.f32 %v467, 0.5
        %v564 = vmul.f32 %v468, 0.5
        %v565 = vmul.f32 %v469, 0.5
        %v566 = vmul.f32 %v470, 0.5
        %v567 = vmul.f32 %v471, 0.5
        %v568 = vmul.f32 %v472, 0.5
        %v569 = vmul.f32 %v473, 0.5
        %v570 = vmul.f32 %v474, 0.5
        %v571 = vmul.f32 %v475, 0.5
        %v572 = vmul.f32 %v476, 0.5
        %v573 = vmul.f32 %v477, 0.5
        %v574 = vmul.f32 %v478, 0.5
        %v575 = vmul.f32 %v479, 0.5
        %v576 = vmul.f32 %v480, 0.5
        %v577 = vmul.f32 %v481, 0.5
        %v578 = vmul.f32 %v482, 0.5
        %v579 = vmul.f32 %v483, 0.5
        %v580 = vmul.f32 %v484, 0.5
        %v581 = vmul.f32 %v485, 0.5
        %v582 = vmul.f32 %v486, 0.5
        %v583 = vmul.f32 %v487, 0.5
        %v584 = vmul.f32 %v488, 0.5
        %v585 = vmul.f32 %v489, 0.5
        %v586 = vmul.f32 %v490, 0.5
        %v587 = vmul.f32 %v491, 0.5
        %v588 = vmul.f32 %v492, 0.5
        %v589 = vmul.f32 %v493, 0.5
        %v590 = vmul.f32 %v494, 0.5
        %v591 = vmul.f32 %v495, 0.5
        %v592 = vmul.f32 %v496, 0.5
        %v593 = vmul.f32 %v497, 0.5
        %v594 = vmul.f32 %v498, 0.5
        %v595 = vmul.f32 %v499, 0.5
        %v596 = vmul.f32 %v500, 0.5
        %v597 = vmul.f32 %v501, 0.5
        %v598 = vmul.f32 %v502, 0.5
        %v599 = vmul.f32 %v503, 0.5
        %v600 = vmul.f32 %v504, 0.5
        %v601 = vmul.f32 %v505, 0.5
        %v602 = vmul.f32 %v506, 0.5
        %v603 = vmul.f32 %v507, 0.5
        %v604 = vmul.f32 %v508, 0.5
        %v605 = vmul.f32 %v509, 0.5
        %v606 = vmul.f32 %v510, 0.5
        %v607 = vmul.f32 %v511, 0.5
        %v608 = vmul.f32 %v512, 0.5
        %v609 = vmul.f32 %v513, 0.5
        %v610 = vmul.f32 %v514, 0.5
        %v611 = vmul.f32 %v515, 0.5
        %v612 = vmul.f32 %v516, 0.5
        %v613 = vmul.f32 %v517, 0.5
        %v614 = vmul.f32 %v518, 0.5
        %v615 = vmul.f32 %v519, 0.5
        %v616 = vmul.f32 %v520, 0.5
        %v617 = vmul.f32 %v521, 0.5
        %v618 = vmul.f32 %v138, %v522
        %v619 = vmul.f32 %v139, %v523
        %v620 = vmul.f32 %v140, %v524
        %v621 = vmul.f32 %v141, %v525
        %v622 = vmul.f32 %v142, %v526
        %v623 = vmul.f32 %v143, %v527
        %v624 = vmul.f32 %v144, %v528
        %v625 = vmul.f32 %v145, %v529
        %v626 = vmul.f32 %v146, %v530
        %v627 = vmul.f32 %v147, %v531
        %v628 = vmul.f32 %v148, %v532
        %v629 = vmul.f32 %v149, %v533
        %v630 = vmul.f32 %v150, %v534
        %v631 = vmul.f32 %v151, %v535
        %v632 = vmul.f32 %v152, %v536
        %v633 = vmul.f32 %v153, %v537
        %v634 = vmul.f32 %v154, %v538
        %v635 = vmul.f32 %v155, %v539
        %v636 = vmul.f32 %v156, %v540
        %v637 = vmul.f32 %v157, %v541
        %v638 = vmul.f32 %v158, %v542
        %v639 = vmul.f32 %v159, %v543
        %v640 = vmul.f32 %v160, %v544
        %v641 = vmul.f32 %v161, %v545
        %v642 = vmul.f32 %v162, %v546
        %v643 = vmul.f32 %v163, %v547
        %v644 = vmul.f32 %v164, %v548
        %v645 = vmul.f32 %v165, %v549
        %v646 = vmul.f32 %v166, %v550
        %v647 = vmul.f32 %v167, %v551
        %v648 = vmul.f32 %v168, %v552
        %v649 = vmul.f32 %v169, %v553
        %v650 = vmul.f32 %v170, %v554
        %v651 = vmul.f32 %v171, %v555
        %v652 = vmul.f32 %v172, %v556
        %v653 = vmul.f32 %v173, %v557
        %v654 = vmul.f32 %v174, %v558
        %v655 = vmul.f32 %v175, %v559
        %v656 = vmul.f32 %v176, %v560
        %v657 = vmul.f32 %v177, %v561
        %v658 = vmul.f32 %v178, %v562
        %v659 = vmul.f32 %v179, %v563
        %v660 = vmul.f32 %v180, %v564
        %v661 = vmul.f32 %v181, %v565
        %v662 = vmul.f32 %v182, %v566
        %v663 = vmul.f32 %v183, %v567
        %v664 = vmul.f32 %v184, %v568
        %v665 = vmul.f32 %v185, %v569
        %v666 = vmul.f32 %v186, %v570
        %v667 = vmul.f32 %v187, %v571
        %v668 = vmul.f32 %v188, %v572
        %v669 = vmul.f32 %v189, %v573
        %v670 = vmul.f32 %v190, %v574
        %v671 = vmul.f32 %v191, %v575
        %v672 = vmul.f32 %v192, %v576
        %v673 = vmul.f32 %v193, %v577
        %v674 = vmul.f32 %v194, %v578
        %v675 = vmul.f32 %v195, %v579
        %v676 = vmul.f32 %v196, %v580
        %v677 = vmul.f32 %v197, %v581
        %v678 = vmul.f32 %v198, %v582
        %v679 = vmul.f32 %v199, %v583
        %v680 = vmul.f32 %v200, %v584
        %v681 = vmul.f32 %v201, %v585
        %v682 = vmul.f32 %v202, %v586
        %v683 = vmul.f32 %v203, %v587
        %v684 = vmul.f32 %v204, %v588
        %v685 = vmul.f32 %v205, %v589
        %v686 = vmul.f32 %v206, %v590
        %v687 = vmul.f32 %v207, %v591
        %v688 = vmul.f32 %v208, %v592
        %v689 = vmul.f32 %v209, %v593
        %v690 = vmul.f32 %v210, %v594
        %v691 = vmul.f32 %v211, %v595
        %v692 = vmul.f32 %v212, %v596
        %v693 = vmul.f32 %v213, %v597
        %v694 = vmul.f32 %v214, %v598
        %v695 = vmul.f32 %v215, %v599
        %v696 = vmul.f32 %v216, %v600
        %v697 = vmul.f32 %v217, %v601
        %v698 = vmul.f32 %v218, %v602
        %v699 = vmul.f32 %v219, %v603
        %v700 = vmul.f32 %v220, %v604
        %v701 = vmul.f32 %v221, %v605
        %v702 = vmul.f32 %v222, %v606
        %v703 = vmul.f32 %v223, %v607
        %v704 = vmul.f32 %v224, %v608
        %v705 = vmul.f32 %v225, %v609
        %v706 = vmul.f32 %v226, %v610
        %v707 = vmul.f32 %v227, %v611
        %v708 = vmul.f32 %v228, %v612
        %v709 = vmul.f32 %v229, %v613
        %v710 = vmul.f32 %v230, %v614
        %v711 = vmul.f32 %v231, %v615
        %v712 = vmul.f32 %v232, %v616
        %v713 = vmul.f32 %v233, %v617
        %714 = vst [vmem:[%s135] sm:$0xff] %v618
        %715 = vst [vmem:[%s135 + $0x8] sm:$0xff] %v619
        %716 = vst [vmem:[%s135 + $0x10] sm:$0xff] %v620
        %717 = vst [vmem:[%s135 + $0x18] sm:$0xff] %v621
        %718 = vst [vmem:[%s135 + $0x20] sm:$0xff] %v622
        %719 = vst [vmem:[%s135 + $0x28] sm:$0xff] %v623
        %720 = vst [vmem:[%s135 + $0x30] sm:$0xff] %v624
        %721 = vst [vmem:[%s135 + $0x38] sm:$0xff] %v625
        %722 = vst [vmem:[%s135 + $0x40] sm:$0xff] %v626
        %723 = vst [vmem:[%s135 + $0x48] sm:$0xff] %v627
        %724 = vst [vmem:[%s135 + $0x50] sm:$0xff] %v628
        %725 = vst [vmem:[%s135 + $0x58] sm:$0xff] %v629
        %726 = vst [vmem:[%s135 + $0x60] sm:$0xff] %v630
        %727 = vst [vmem:[%s135 + $0x68] sm:$0xff] %v631
        %728 = vst [vmem:[%s135 + $0x70] sm:$0xff] %v632
        %729 = vst [vmem:[%s135 + $0x78] sm:$0xff] %v633
        %730 = vst [vmem:[%s135 + $0x80] sm:$0xff] %v634
        %731 = vst [vmem:[%s135 + $0x88] sm:$0xff] %v635
        %732 = vst [vmem:[%s135 + $0x90] sm:$0xff] %v636
        %733 = vst [vmem:[%s135 + $0x98] sm:$0xff] %v637
        %734 = vst [vmem:[%s135 + $0xa0] sm:$0xff] %v638
        %735 = vst [vmem:[%s135 + $0xa8] sm:$0xff] %v639
        %736 = vst [vmem:[%s135 + $0xb0] sm:$0xff] %v640
        %737 = vst [vmem:[%s135 + $0xb8] sm:$0xff] %v641
        %738 = vst [vmem:[%s135 + $0xc0] sm:$0xff] %v642
        %739 = vst [vmem:[%s135 + $0xc8] sm:$0xff] %v643
        %740 = vst [vmem:[%s135 + $0xd0] sm:$0xff] %v644
        %741 = vst [vmem:[%s135 + $0xd8] sm:$0xff] %v645
        %742 = vst [vmem:[%s135 + $0xe0] sm:$0xff] %v646
        %743 = vst [vmem:[%s135 + $0xe8] sm:$0xff] %v647
        %744 = vst [vmem:[%s135 + $0xf0] sm:$0xff] %v648
        %745 = vst [vmem:[%s135 + $0xf8] sm:$0xff] %v649
        %746 = vst [vmem:[%s135 + $0x100] sm:$0xff] %v650
        %747 = vst [vmem:[%s135 + $0x108] sm:$0xff] %v651
        %748 = vst [vmem:[%s135 + $0x110] sm:$0xff] %v652
        %749 = vst [vmem:[%s135 + $0x118] sm:$0xff] %v653
        %750 = vst [vmem:[%s135 + $0x120] sm:$0xff] %v654
        %751 = vst [vmem:[%s135 + $0x128] sm:$0xff] %v655
        %752 = vst [vmem:[%s135 + $0x130] sm:$0xff] %v656
        %753 = vst [vmem:[%s135 + $0x138] sm:$0xff] %v657
        %754 = vst [vmem:[%s135 + $0x140] sm:$0xff] %v658
        %755 = vst [vmem:[%s135 + $0x148] sm:$0xff] %v659
        %756 = vst [vmem:[%s135 + $0x150] sm:$0xff] %v660
        %757 = vst [vmem:[%s135 + $0x158] sm:$0xff] %v661
        %758 = vst [vmem:[%s135 + $0x160] sm:$0xff] %v662
        %759 = vst [vmem:[%s135 + $0x168] sm:$0xff] %v663
        %760 = vst [vmem:[%s135 + $0x170] sm:$0xff] %v664
        %761 = vst [vmem:[%s135 + $0x178] sm:$0xff] %v665
        %762 = vst [vmem:[%s135 + $0x180] sm:$0xff] %v666
        %763 = vst [vmem:[%s135 + $0x188] sm:$0xff] %v667
        %764 = vst [vmem:[%s135 + $0x190] sm:$0xff] %v668
        %765 = vst [vmem:[%s135 + $0x198] sm:$0xff] %v669
        %766 = vst [vmem:[%s135 + $0x1a0] sm:$0xff] %v670
        %767 = vst [vmem:[%s135 + $0x1a8] sm:$0xff] %v671
        %768 = vst [vmem:[%s135 + $0x1b0] sm:$0xff] %v672
        %769 = vst [vmem:[%s135 + $0x1b8] sm:$0xff] %v673
        %770 = vst [vmem:[%s135 + $0x1c0] sm:$0xff] %v674
        %771 = vst [vmem:[%s135 + $0x1c8] sm:$0xff] %v675
        %772 = vst [vmem:[%s135 + $0x1d0] sm:$0xff] %v676
        %773 = vst [vmem:[%s135 + $0x1d8] sm:$0xff] %v677
        %774 = vst [vmem:[%s135 + $0x1e0] sm:$0xff] %v678
        %775 = vst [vmem:[%s135 + $0x1e8] sm:$0xff] %v679
        %776 = vst [vmem:[%s135 + $0x1f0] sm:$0xff] %v680
        %777 = vst [vmem:[%s135 + $0x1f8] sm:$0xff] %v681
        %778 = vst [vmem:[%s135 + $0x200] sm:$0xff] %v682
        %779 = vst [vmem:[%s135 + $0x208] sm:$0xff] %v683
        %780 = vst [vmem:[%s135 + $0x210] sm:$0xff] %v684
        %781 = vst [vmem:[%s135 + $0x218] sm:$0xff] %v685
        %782 = vst [vmem:[%s135 + $0x220] sm:$0xff] %v686
        %783 = vst [vmem:[%s135 + $0x228] sm:$0xff] %v687
        %784 = vst [vmem:[%s135 + $0x230] sm:$0xff] %v688
        %785 = vst [vmem:[%s135 + $0x238] sm:$0xff] %v689
        %786 = vst [vmem:[%s135 + $0x240] sm:$0xff] %v690
        %787 = vst [vmem:[%s135 + $0x248] sm:$0xff] %v691
        %788 = vst [vmem:[%s135 + $0x250] sm:$0xff] %v692
        %789 = vst [vmem:[%s135 + $0x258] sm:$0xff] %v693
        %790 = vst [vmem:[%s135 + $0x260] sm:$0xff] %v694
        %791 = vst [vmem:[%s135 + $0x268] sm:$0xff] %v695
        %792 = vst [vmem:[%s135 + $0x270] sm:$0xff] %v696
        %793 = vst [vmem:[%s135 + $0x278] sm:$0xff] %v697
        %794 = vst [vmem:[%s135 + $0x280] sm:$0xff] %v698
        %795 = vst [vmem:[%s135 + $0x288] sm:$0xff] %v699
        %796 = vst [vmem:[%s135 + $0x290] sm:$0xff] %v700
        %797 = vst [vmem:[%s135 + $0x298] sm:$0xff] %v701
        %798 = vst [vmem:[%s135 + $0x2a0] sm:$0xff] %v702
        %799 = vst [vmem:[%s135 + $0x2a8] sm:$0xff] %v703
        %800 = vst [vmem:[%s135 + $0x2b0] sm:$0xff] %v704
        %801 = vst [vmem:[%s135 + $0x2b8] sm:$0xff] %v705
        %802 = vst [vmem:[%s135 + $0x2c0] sm:$0xff] %v706
        %803 = vst [vmem:[%s135 + $0x2c8] sm:$0xff] %v707
        %804 = vst [vmem:[%s135 + $0x2d0] sm:$0xff] %v708
        %805 = vst [vmem:[%s135 + $0x2d8] sm:$0xff] %v709
        %806 = vst [vmem:[%s135 + $0x2e0] sm:$0xff] %v710
        %807 = vst [vmem:[%s135 + $0x2e8] sm:$0xff] %v711
        %808 = vst [vmem:[%s135 + $0x2f0] sm:$0xff] %v712
        %809 = vst [vmem:[%s135 + $0x2f8] sm:$0xff] %v713
        %s810 = sand.u32 %s52, 1
        %s811 = scalar_lea.sflag [#allocation4], %s810
        %s812 = sand.u32 %s52, 1
        %s813 = smul.addr %s812, 768
        %s814 = scalar_lea.vmem [#allocation5], %s813
        // Predicated region
        $region29: #{tpu_custom_call.1} parent=23 // pred_check
          %p815 = pneg %p62
        $region30: #{tpu_custom_call.1} parent=23 // pred_check_branch
          %817 = sbr.rel (%p815) target = $region32
        $region31: #{tpu_custom_call.1} parent=23 // pred_region
          %s818 = smul.u32 6, %s18
          %s820 = ssub.s32 12288, 12288
          %821 = vsyncadd %s811, %s820
          %s822 = smul.addr %s818, 16
          %s823 = smul.addr %s822, 128
          %s824 = scalar_lea.hbm %s1, %s823
          %s825 = sshll.u32 %s814, 4
          %s826 = int_to_ptr.vmem [resolvable:$true] %s825
          %831 = dma.vmem_to_hbm [thread:$0]  %s826, 12288, %s824, %s811, 2048, 2048, 128
        $region32: #{tpu_custom_call.1} parent=23 // pred_fallthru
          _
      $region24: #{tpu_custom_call.1} parent=5 // pred_fallthru
        _
      %p832 = scmp.le.s32.totalorder 2, %s13
      // Predicated region
      $region33: #{tpu_custom_call.1} parent=5 // pred_check
        %p833 = pneg %p832
      $region34: #{tpu_custom_call.1} parent=5 // pred_check_branch
        %835 = sbr.rel (%p833) target = $region36
      $region35: #{tpu_custom_call.1} parent=5 // pred_region
        %s836 = ssub.s32 %s13, 2
        // Predicated region
        $region37: #{tpu_custom_call.1} parent=35 // pred_check
          %p837 = pneg %p68
        $region38: #{tpu_custom_call.1} parent=35 // pred_check_branch
          %839 = sbr.rel (%p837) target = $region40
        $region39: #{tpu_custom_call.1} parent=35 // pred_region
          %s840 = sand.u32 %s53, 1
          %s841 = scalar_lea.sflag [#allocation4], %s840
          %s842 = sand.u32 %s53, 1
          %s843 = smul.addr %s842, 768
          %s844 = scalar_lea.vmem [#allocation5], %s843
          %845 = dma.done %s841, 12288
        $region40: #{tpu_custom_call.1} parent=35 // pred_fallthru
          _
      $region36: #{tpu_custom_call.1} parent=5 // pred_fallthru
        _
    $region6: #{tpu_custom_call.1} parent=1 // loop_footer
      %s17 = sadd.s32 1, %s13
    $region7: #{tpu_custom_call.1} parent=1 // loop_footer_branch
      %12 = sbr.rel target = $region3
    $region8: #{tpu_custom_call.1} parent=1 // loop_exit
      _
    %846 = vsyncpa [#allocation3], 1
    %s847 = scalar_lea.sflag [#allocation3], 1
    %848 = vsyncpa %s847, 1
    %849 = vsyncpa [#allocation4], 1
    %s850 = scalar_lea.sflag [#allocation4], 1
    %851 = vsyncpa %s850, 1

</llo_original>
